<compile_context>
chip_gen: v5e
topology: v5e:2x2
jax: 0.10.0
libtpu: 0.0.40
codegen_flags: <defaults>
</compile_context>

<pallas_src>
import jax
import jax.numpy as jnp
from jax.experimental import pallas as pl
from jax.experimental.pallas import tpu as pltpu

_LANES = 128            # vreg lane width; slab last dim
_MAX_BLOCK_ROWS = 1024  # ~512 KiB/tile/array; 2 arrays x 2 bufs ~ 2 MiB << VMEM on all gens


def _round_up(x, m):
    return (x + m - 1) // m * m


def dep_weights_kernel(xT_ref, w_ref, b_ref, out_ref):
    """softmax(Linear(att_dim, 1)(input).T, dim=-1) -> (1, N)."""
    # (D, N) * (D, 1) then sublane-reduce over D: avoids a degenerate M=1 MXU pass.
    scores = jnp.sum(xT_ref[...] * w_ref[...], axis=0, keepdims=True) + b_ref[...]  # (1, N)
    m = jnp.max(scores, axis=-1, keepdims=True)
    e = jnp.exp(scores - m)
    out_ref[...] = e / jnp.sum(e, axis=-1, keepdims=True)


def dep_gather_kernel(wts_ref, adj_ref, out_ref):
    """out[r, c] = wts[adj[r, c]] if adj[r, c] != 0 else 0, on a lane-dense tile."""
    n_dep = wts_ref.shape[0]
    adj = adj_ref[...]                              # (block_rows, 128) int32
    acc = jnp.zeros(adj.shape, jnp.float32)
    # Each element matches at most one n -> pure compare+select (no vadd per n).
    # n_dep (dependency-relation vocabulary) is small; static unroll is fine.
    # Weights come from SMEM scalars -> scalar-slot load + splat, no lane shuffles.
    for n in range(1, n_dep):
        acc = jnp.where(adj == n, wts_ref[n], acc)  # adj == 0 (and OOR) stays 0
    out_ref[...] = acc


def dep_imp_forward(x, weight, bias, syn_dep_adj, overall_max_len, batch_size):
    """x: (N, att_dim) f32, weight: (1, att_dim), bias: (1,), syn_dep_adj: (B, L, L) int."""
    n_dep, att_dim = x.shape
    B, L, L2 = syn_dep_adj.shape
    assert B == batch_size and L == overall_max_len and L2 == overall_max_len

    xT = jnp.asarray(x, jnp.float32).T                            # (D, N)
    w_col = jnp.asarray(weight, jnp.float32).reshape(att_dim, 1)  # (D, 1)
    b = jnp.asarray(bias, jnp.float32).reshape(1, 1)              # (1, 1)

    # --- Kernel 1 (tiny, one-shot): softmax attention weights over the N dep embeddings.
    wts = pl.pallas_call(
        dep_weights_kernel,
        out_shape=jax.ShapeDtypeStruct((1, n_dep), jnp.float32),
        in_specs=[
            pl.BlockSpec(memory_space=pltpu.MemorySpace.VMEM),  # xT
            pl.BlockSpec(memory_space=pltpu.MemorySpace.VMEM),  # w_col
            pl.BlockSpec(memory_space=pltpu.MemorySpace.VMEM),  # b
        ],
        out_specs=pl.BlockSpec(memory_space=pltpu.MemorySpace.VMEM),
    )(xT, w_col, b)
    wts = wts.reshape(n_dep)                                      # (N,) -> SMEM scalars

    # --- Kernel 2 (streaming): lane-dense gather + mask over a (rows, 128) slab.
    adj_flat = jnp.asarray(syn_dep_adj, jnp.int32).reshape(-1)
    total = adj_flat.shape[0]
    rows = -(-total // _LANES)
    block_rows = min(_MAX_BLOCK_ROWS, _round_up(rows, 8))
    padded_rows = _round_up(rows, block_rows)
    pad = padded_rows * _LANES - total
    adj_slab = jnp.pad(adj_flat, (0, pad)).reshape(padded_rows, _LANES)  # pad with 0 -> masked

    out_slab = pl.pallas_call(
        dep_gather_kernel,
        out_shape=jax.ShapeDtypeStruct((padded_rows, _LANES), jnp.float32),
        grid=(padded_rows // block_rows,),
        in_specs=[
            pl.BlockSpec(memory_space=pltpu.MemorySpace.SMEM),           # weights (N,)
            pl.BlockSpec((block_rows, _LANES), lambda i: (i, 0)),        # adj tile
        ],
        out_specs=pl.BlockSpec((block_rows, _LANES), lambda i: (i, 0)),  # out tile
        compiler_params=pltpu.CompilerParams(
            dimension_semantics=("parallel",),       # shard row tiles across v7x's 2 TCs
            vmem_limit_bytes=32 * 1024 * 1024,
        ),
    )(wts, adj_slab)

    return out_slab.reshape(-1)[:total].reshape(B, L, L)


def dep_imp_reference(x, weight, bias, syn_dep_adj):
    """Pure-JAX reference mirroring the PyTorch forward."""
    scores = (x @ weight.T + bias).T                  # (1, N)
    att_w = jax.nn.softmax(scores, axis=-1)[0]        # (N,)
    gathered = jnp.take(att_w, syn_dep_adj, axis=0)   # (B, L, L)
    return jnp.where(syn_dep_adj == 0, 0.0, gathered)


if __name__ == "__main__":
    key = jax.random.PRNGKey(0)
    att_dim = 32          # hidden size of `input`
    n_dep = 8             # number of rows of `input` (dependency-type embeddings)
    batch_size = 2
    overall_max_len = 16

    k1, k2, k3, k4 = jax.random.split(key, 4)
    x = jax.random.normal(k1, (n_dep, att_dim), jnp.float32)
    q_weight = jax.random.normal(k2, (1, att_dim), jnp.float32) * 0.1
    q_bias = jax.random.normal(k3, (1,), jnp.float32) * 0.1
    syn_dep_adj = jax.random.randint(
        k4, (batch_size, overall_max_len, overall_max_len), 0, n_dep, jnp.int32)

    out = dep_imp_forward(x, q_weight, q_bias, syn_dep_adj,
                          overall_max_len, batch_size)
    out = jax.block_until_ready(out)

    ref = dep_imp_reference(x, q_weight, q_bias, syn_dep_adj)
    assert out.shape == (batch_size, overall_max_len, overall_max_len)
    assert jnp.allclose(out, ref, atol=1e-6), "Pallas kernel mismatch vs reference"

    print("KERNEL_OK")
</pallas_src>

<mosaic_0001>
module attributes {stable_mosaic.version = 11 : i64} {
  func.func @dep_weights_kernel(%arg0: memref<32x8xf32, #tpu.memory_space<vmem>>, %arg1: memref<32x1xf32, #tpu.memory_space<vmem>>, %arg2: memref<1x1xf32, #tpu.memory_space<vmem>>, %arg3: memref<1x8xf32, #tpu.memory_space<vmem>>) attributes {dimension_semantics = [], scalar_prefetch = 0 : i64, scratch_operands = 0 : i64, tpu.core_type = #tpu.core_type<tc>} {
    %c0 = arith.constant 0 : index
    %c0_0 = arith.constant 0 : index
    %0 = vector.load %arg0[%c0, %c0_0] : memref<32x8xf32, #tpu.memory_space<vmem>>, vector<32x8xf32>
    %c0_1 = arith.constant 0 : index
    %c0_2 = arith.constant 0 : index
    %1 = vector.load %arg1[%c0_1, %c0_2] : memref<32x1xf32, #tpu.memory_space<vmem>>, vector<32x1xf32>
    %2 = vector.broadcast %1 : vector<32x1xf32> to vector<32x8xf32>
    %3 = arith.mulf %0, %2 : vector<32x8xf32>
    %cst = arith.constant dense<0.000000e+00> : vector<8xf32>
    %4 = vector.multi_reduction <add>, %3, %cst [0] : vector<32x8xf32> to vector<8xf32>
    %5 = vector.shape_cast %4 : vector<8xf32> to vector<1x8xf32>
    %c0_3 = arith.constant 0 : index
    %c0_4 = arith.constant 0 : index
    %6 = vector.load %arg2[%c0_3, %c0_4] : memref<1x1xf32, #tpu.memory_space<vmem>>, vector<1x1xf32>
    %7 = vector.broadcast %6 : vector<1x1xf32> to vector<1x8xf32>
    %8 = arith.addf %5, %7 : vector<1x8xf32>
    %cst_5 = arith.constant dense<0xFF800000> : vector<1xf32>
    %9 = vector.multi_reduction <maximumf>, %8, %cst_5 [1] : vector<1x8xf32> to vector<1xf32>
    %10 = vector.shape_cast %9 : vector<1xf32> to vector<1x1xf32>
    %11 = vector.broadcast %10 : vector<1x1xf32> to vector<1x8xf32>
    %12 = arith.subf %8, %11 : vector<1x8xf32>
    %13 = math.exp %12 : vector<1x8xf32>
    %cst_6 = arith.constant dense<0.000000e+00> : vector<1xf32>
    %14 = vector.multi_reduction <add>, %13, %cst_6 [1] : vector<1x8xf32> to vector<1xf32>
    %15 = vector.shape_cast %14 : vector<1xf32> to vector<1x1xf32>
    %16 = vector.broadcast %15 : vector<1x1xf32> to vector<1x8xf32>
    %17 = arith.divf %13, %16 : vector<1x8xf32>
    %c0_7 = arith.constant 0 : index
    %c0_8 = arith.constant 0 : index
    %18 = vector.load %arg3[%c0_7, %c0_8] : memref<1x8xf32, #tpu.memory_space<vmem>>, vector<1x8xf32>
    tpu.vector_store %arg3[%c0_7, %c0_8], %17 {strides = array<i32>} : memref<1x8xf32, #tpu.memory_space<vmem>>, vector<1x8xf32>,
    return
  }
}

</mosaic_0001>

<llo_original>
// kernel: tpu_custom_call.1
$region0: #{tpu_custom_call.1}
  #allocation0 [shape = 'u32[]', space=smem, size = 0x4, offset = 0x4, fixed_abs, tag = 'smem constant byte address 0x4 - core index']
  #allocation1 [shape = 'u32[72,128]{1,0:T(1,128)}', space=vmem, size = 0x9000, scoped, tag = 'internal scratch']
  #allocation2 [shape = 'f32[1,1]{1,0:T(1,128)S(1)}', space=vmem, size = 0x200, scoped, tag = 'scoped memory for tpu_custom_call.1']
  %s0 = inlined_call_operand.vmem [shape: f32[32,8], index: 0, kind: input, shape index: {}]
  %s1 = inlined_call_operand.vmem [shape: f32[32,1], index: 1, kind: input, shape index: {}]
  %s2 = inlined_call_operand.<no memory space> [shape: f32[1,1], index: 2, kind: input, shape index: {}]
  %s3 = inlined_call_operand.hbm [shape: f32[1,8], index: 3, kind: output, shape index: {}]
  %s4 = sld [smem:[#allocation0]]
  $region22: #{tpu_custom_call.1} parent=0
    _
  %s6 = ssub.s32 1, %s4
  %s7 = scalar_select 0, %s6, %s4
  %v8 = vstv %s2
  %9 = vst [vmem:[#allocation2] sm:$0x1] %v8
  $region1: #{tpu_custom_call.1} parent=0
    #allocation3 [shape = 'u8[512]{0}', space=vmem, size = 0x400, scoped, tag = 'output window, operand 0, single buffered']
    #allocation4 [shape = 's32[1]{0}', space=sflag, size = 0x4, scoped, tag = 'scoped memory for tpu_custom_call.1']
    %10 = vsyncpa [#allocation4], 0
    // Predicated region
    $region2: #{tpu_custom_call.1} parent=1 // pred_check
      _
    $region3: #{tpu_custom_call.1} parent=1 // pred_check_branch
      %12 = sbr.rel (0) target = $region5
    $region4: #{tpu_custom_call.1} parent=1 // pred_region
      _
    $region5: #{tpu_custom_call.1} parent=1 // pred_fallthru
      _
    // Predicated region
    $region6: #{tpu_custom_call.1} parent=1 // pred_check
      _
    $region7: #{tpu_custom_call.1} parent=1 // pred_check_branch
      %14 = sbr.rel (0) target = $region9
    $region8: #{tpu_custom_call.1} parent=1 // pred_region
      _
    $region9: #{tpu_custom_call.1} parent=1 // pred_fallthru
      _
    // Predicated region
    $region10: #{tpu_custom_call.1} parent=1 // pred_check
      _
    $region11: #{tpu_custom_call.1} parent=1 // pred_check_branch
      %16 = sbr.rel (0) target = $region13
    $region12: #{tpu_custom_call.1} parent=1 // pred_region
      _
    $region13: #{tpu_custom_call.1} parent=1 // pred_fallthru
      _
    %v17 = vld [vmem:[%s0] sm:$0xff]
    %v18 = vld [vmem:[%s0 + $0x8] sm:$0xff]
    %v19 = vld [vmem:[%s0 + $0x10] sm:$0xff]
    %v20 = vld [vmem:[%s0 + $0x18] sm:$0xff]
    %v21 = vld [vmem:[%s1] sm:$0xff]
    %v22 = vld [vmem:[%s1 + $0x8] sm:$0xff]
    %v23 = vld [vmem:[%s1 + $0x10] sm:$0xff]
    %v24 = vld [vmem:[%s1 + $0x18] sm:$0xff]
    %26 = vset.pattern.permute.xlu0 0
    %27 = vperm.xlu0 %26, %v21
    %v28 = vpop.permute.xlu0 %27
    %31 = vset.pattern.permute.xlu0 0
    %32 = vperm.xlu0 %31, %v22
    %v33 = vpop.permute.xlu0 %32
    %36 = vset.pattern.permute.xlu0 0
    %37 = vperm.xlu0 %36, %v23
    %v38 = vpop.permute.xlu0 %37
    %41 = vset.pattern.permute.xlu0 0
    %42 = vperm.xlu0 %41, %v24
    %v43 = vpop.permute.xlu0 %42
    %v45 = vmul.f32 %v17, %v28
    %v46 = vmul.f32 %v18, %v33
    %v47 = vmul.f32 %v19, %v38
    %v48 = vmul.f32 %v20, %v43
    %vm49 = vcmask 64512
    %v50 = vsel %vm49, %v45, 0.0
    %v51 = vsel %vm49, %v46, 0.0
    %v52 = vadd.f32 %v50, %v51
    %v53 = vsel %vm49, %v47, 0.0
    %v54 = vadd.f32 %v52, %v53
    %v55 = vsel %vm49, %v48, 0.0
    %v56 = vadd.f32 %v54, %v55
    %v57 = vrot.slane %v56, 4
    %v58 = vadd.f32 %v56, %v57
    %v59 = vrot.slane %v58, 2
    %v60 = vadd.f32 %v58, %v59
    %v61 = vrot.slane %v60, 1
    %v62 = vadd.f32 %v60, %v61
    %v63 = vld [vmem:[#allocation2] sm:$0x1]
    %65 = vset.pattern.permute.xlu0 0
    %66 = vperm.xlu0 %65, %v63
    %v67 = vpop.permute.xlu0 %66
    %v69 = vperm.slane %v67, 0
    %v70 = vadd.f32 %v62, %v69
    %v71 = vsel %vm49, %v70, -inf
    %72 = vmax.xlane.f32.xlu0 %v71
    %v73 = vpop.xlane.xlu0 %72
    %v74 = vsub.f32 %v70, %v73
    %v75 = vmul.f32 %v74, 1.442695
    %v76 = vpow.pop %v75
    %v77 = vsel %vm49, %v76, 0.0
    %78 = vadd.xlane.f32.xlu0 %v77
    %v79 = vpop.xlane.xlu0 %78
    %v80 = vrcp.pop %v79
    %v81 = vmul.f32 %v79, %v80
    %v82 = vsub.f32 1.0, %v81
    %v83 = vmul.f32 %v80, %v82
    %v84 = vadd.f32 %v80, %v83
    %vm85 = vweird.f32 %v79
    %vm86 = vweird.f32 %v80
    %vm87 = vmor %vm85, %vm86
    %v88 = vsel %vm87, %v80, %v84
    %v89 = vand.u32 2147483647, %v79
    %vm90 = vcmp.eq.f32.partialorder %v89, 8.507059e+37
    %v91 = vand.u32 %v79, 2147483648
    %v92 = vor.u32 1.1754944e-38, %v91
    %v93 = vsel %vm90, %v92, %v88
    %v94 = vmul.f32 %v76, %v93
    %vm95 = vcmask 57344
    %96 = vst.msk [vmem:[#allocation3] sm:$0x1] %vm95, %v94
    // Predicated region
    $region14: #{tpu_custom_call.1} parent=1 // pred_check
      _
    $region15: #{tpu_custom_call.1} parent=1 // pred_check_branch
      %98 = sbr.rel (0) target = $region17
    $region16: #{tpu_custom_call.1} parent=1 // pred_region
      %100 = vsyncadd [#allocation4], 0
      %s102 = sshll.u32 [#allocation3], 4
      %s103 = int_to_ptr.vmem [resolvable:$true] %s102
      %s104 = sshll.u32 %s3, 4
      %s105 = int_to_ptr.hbm [resolvable:$true] %s104
      %107 = dma.vmem_to_hbm [thread:$0]  %s103, 16, %s105, [#allocation4]
    $region17: #{tpu_custom_call.1} parent=1 // pred_fallthru
      _
    // Predicated region
    $region18: #{tpu_custom_call.1} parent=1 // pred_check
      _
    $region19: #{tpu_custom_call.1} parent=1 // pred_check_branch
      %109 = sbr.rel (0) target = $region21
    $region20: #{tpu_custom_call.1} parent=1 // pred_region
      %111 = dma.done [#allocation4], 16
    $region21: #{tpu_custom_call.1} parent=1 // pred_fallthru
      _
    %112 = vsyncpa [#allocation4], 1

</llo_original>
